<compile_context>
chip_gen: v5e
topology: v5e:2x2
jax: 0.10.0
libtpu: 0.0.40
codegen_flags: <defaults>
</compile_context>

<pallas_src>
import functools
import numpy as np
import jax
import jax.numpy as jnp
from jax.experimental import pallas as pl
from jax.experimental.pallas import tpu as pltpu


# ----------------------------------------------------------------------------
# Kernel 1: lane-dense partial sums / sums-of-squares per (b-tile, channel)
#   sum_ref/sq_ref block: (1, TC, 128) f32, lane parity encodes real/imag.
# ----------------------------------------------------------------------------
def _stats_kernel(x_ref, sum_ref, sq_ref):
    l = pl.program_id(2)

    @pl.when(l == 0)
    def _():
        sum_ref[...] = jnp.zeros(sum_ref.shape, sum_ref.dtype)
        sq_ref[...] = jnp.zeros(sq_ref.shape, sq_ref.dtype)

    tb, tc, tl = x_ref.shape
    if tl % 128 == 0:
        # Lane-dense accumulation: 128-lane column slabs, VPU adds only.
        s = jnp.zeros((tc, 128), jnp.float32)
        q = jnp.zeros((tc, 128), jnp.float32)
        for g in range(tl // 128):
            blk = x_ref[:, :, g * 128:(g + 1) * 128].astype(jnp.float32)
            s = s + jnp.sum(blk, axis=0)
            q = q + jnp.sum(blk * blk, axis=0)
        sum_ref[0] = sum_ref[0] + s
        sq_ref[0] = sq_ref[0] + q
    else:
        # Fallback (last dim not a multiple of 128 -> single full-extent block):
        # masked per-parity reductions into lanes 0 (real) / 1 (imag).
        xf = x_ref[...].astype(jnp.float32)
        par = jax.lax.broadcasted_iota(jnp.int32, xf.shape, 2) % 2
        for p in (0, 1):
            msk = (par == p)
            sum_ref[0:1, :, p:p + 1] += jnp.sum(
                jnp.where(msk, xf, 0.0), axis=(0, 2), keepdims=True)
            sq_ref[0:1, :, p:p + 1] += jnp.sum(
                jnp.where(msk, xf * xf, 0.0), axis=(0, 2), keepdims=True)


# ----------------------------------------------------------------------------
# Kernel 2: y = x * scale[channel, parity] + shift[channel, parity]
#   sc_ref/sh_ref block: (TC, 128) f32, lane k holds component (k % 2).
# ----------------------------------------------------------------------------
def _apply_kernel(x_ref, sc_ref, sh_ref, o_ref):
    tb, tc, tl = x_ref.shape
    sc = sc_ref[...]
    sh = sh_ref[...]
    if tl % 128 == 0:
        for g in range(tl // 128):
            sl = slice(g * 128, (g + 1) * 128)
            xb = x_ref[:, :, sl].astype(jnp.float32)          # (tb, tc, 128)
            o_ref[:, :, sl] = (xb * sc + sh).astype(o_ref.dtype)
    else:
        xf = x_ref[...].astype(jnp.float32)
        par = jax.lax.broadcasted_iota(jnp.int32, xf.shape, 2) % 2
        scf = jnp.where(par == 0, sc[:, 0:1], sc[:, 1:2])
        shf = jnp.where(par == 0, sh[:, 0:1], sh[:, 1:2])
        o_ref[...] = (xf * scf + shf).astype(o_ref.dtype)


# ----------------------------------------------------------------------------
# Tile selection: (TB, TC, TL) blocks targeting ~block_bytes of VMEM.
# ----------------------------------------------------------------------------
def _pick_tiles(B, C, L2, esize, budget):
    # channel (second-to-last) tile: full C, or a multiple-of-8 divisor <= 128
    if C <= 128 or C % 8 != 0:
        TC = C
    else:
        TC = 8
        for d in range(128, 7, -8):
            if C % d == 0:
                TC = d
                break
    # lane tile: multiple of 128 dividing L2, bounded by VMEM budget and 4096
    # (keeps the in-kernel 128-lane loop short); else the full extent.
    if L2 % 128 == 0:
        cap = max(128, min(L2, 4096, budget // max(1, TC * esize)))
        TL = 128
        for k in range(cap // 128, 0, -1):
            t = 128 * k
            if L2 % t == 0:
                TL = t
                break
    else:
        TL = L2
    # batch tile: divisor of B filling the remaining budget; keep >= 2 b-tiles
    # when B >= 2 so the stats pass can use both TensorCores on v7x.
    max_tb = max(1, budget // max(1, TC * TL * esize))
    if B >= 2:
        max_tb = min(max_tb, B // 2)
    TB = 1
    for t in range(min(B, max_tb), 0, -1):
        if B % t == 0:
            TB = t
            break
    return TB, TC, TL


# ----------------------------------------------------------------------------
# CBatchNorm2d.forward (training mode: batch stats, affine)
# ----------------------------------------------------------------------------
def cbatchnorm2d(x, gamma, beta, eps=1e-5, *, block_bytes=2 * 1024 * 1024):
    """x: (B, C, H, W, 2).  gamma/beta: (2, C) -> [real_b, im_b] affine params.

    Matches torch.stack([BatchNorm2d(x[...,0]), BatchNorm2d(x[...,1])], dim=-1)
    in training mode (batch statistics, biased variance, affine transform).
    """
    B, C, H, W, two = x.shape
    assert two == 2, "last dim must hold (real, imag)"
    L2 = H * W * 2
    esize = jnp.dtype(x.dtype).itemsize

    x3 = x.reshape(B, C, L2)                     # contiguous view -> no copy
    TB, TC, TL = _pick_tiles(B, C, L2, esize, block_bytes)
    nb, nc, nl = B // TB, C // TC, L2 // TL

    # ---- pass 1: lane-dense partial statistics (reduction axis last) -------
    sums, sqs = pl.pallas_call(
        _stats_kernel,
        out_shape=(jax.ShapeDtypeStruct((nb, C, 128), jnp.float32),
                   jax.ShapeDtypeStruct((nb, C, 128), jnp.float32)),
        grid=(nb, nc, nl),
        in_specs=[pl.BlockSpec((TB, TC, TL), lambda b, c, l: (b, c, l))],
        out_specs=(pl.BlockSpec((1, TC, 128), lambda b, c, l: (b, c, 0)),
                   pl.BlockSpec((1, TC, 128), lambda b, c, l: (b, c, 0))),
        compiler_params=pltpu.CompilerParams(
            dimension_semantics=("parallel", "parallel", "arbitrary")),
    )(x3)

    # ---- tiny finalize in the wrapper (fused by XLA, negligible HBM) -------
    sum_c = jnp.sum(sums, axis=0)                      # (C, 128)
    sq_c = jnp.sum(sqs, axis=0)
    stat_sum = jnp.sum(sum_c.reshape(C, 64, 2), axis=1)   # (C, 2): [real, imag]
    stat_sq = jnp.sum(sq_c.reshape(C, 64, 2), axis=1)
    n = jnp.float32(B * H * W)
    mean = stat_sum / n
    var = jnp.maximum(stat_sq / n - mean * mean, 0.0)     # biased, clamped >= 0
    rstd = jax.lax.rsqrt(var + jnp.float32(eps))
    g2 = jnp.transpose(gamma).astype(jnp.float32)          # (C, 2)
    b2 = jnp.transpose(beta).astype(jnp.float32)
    scale2 = g2 * rstd
    shift2 = b2 - mean * scale2
    sc128 = jnp.tile(scale2, (1, 64))                      # (C, 128), lane k -> comp k%2
    sh128 = jnp.tile(shift2, (1, 64))

    # ---- pass 2: apply y = x*scale + shift, fully parallel, dtype-preserving
    y3 = pl.pallas_call(
        _apply_kernel,
        out_shape=jax.ShapeDtypeStruct((B, C, L2), x.dtype),
        grid=(nb, nc, nl),
        in_specs=[pl.BlockSpec((TB, TC, TL), lambda b, c, l: (b, c, l)),
                  pl.BlockSpec((TC, 128), lambda b, c, l: (c, 0)),
                  pl.BlockSpec((TC, 128), lambda b, c, l: (c, 0))],
        out_specs=pl.BlockSpec((TB, TC, TL), lambda b, c, l: (b, c, l)),
        compiler_params=pltpu.CompilerParams(
            dimension_semantics=("parallel", "parallel", "parallel")),
    )(x3, sc128, sh128)

    return y3.reshape(B, C, H, W, 2)            # contiguous view -> no copy

    # TODO(synk): running_mean / running_var momentum updates (a training-time
    # buffer side-effect of nn.BatchNorm2d) are not materialized; only the
    # forward output is produced.


if __name__ == "__main__":
    B, C, H, W = 2, 4, 16, 16
    eps = 1e-5

    key = jax.random.PRNGKey(0)
    kx, kg, kb = jax.random.split(key, 3)
    x = jax.random.normal(kx, (B, C, H, W, 2), jnp.float32)
    gamma = 1.0 + 0.1 * jax.random.normal(kg, (2, C), jnp.float32)
    beta = 0.1 * jax.random.normal(kb, (2, C), jnp.float32)

    # pure-JAX reference (training-mode BatchNorm2d on each component)
    def bn_ref(z, g, b):
        mean = jnp.mean(z, axis=(0, 2, 3), keepdims=True)
        var = jnp.var(z, axis=(0, 2, 3), keepdims=True)  # biased
        zn = (z - mean) / jnp.sqrt(var + eps)
        return zn * g[None, :, None, None] + b[None, :, None, None]

    ref = jnp.stack([bn_ref(x[..., 0], gamma[0], beta[0]),
                     bn_ref(x[..., 1], gamma[1], beta[1])], axis=-1)

    # default (large) blocks, plus tiny blocks to exercise the multi-step
    # reduction / multi-tile apply paths.
    for bb in (2 * 1024 * 1024, 4096):
        fn = jax.jit(functools.partial(cbatchnorm2d, eps=eps, block_bytes=bb))
        y = jax.block_until_ready(fn(x, gamma, beta))
        np.testing.assert_allclose(np.asarray(y), np.asarray(ref),
                                   atol=1e-3, rtol=1e-3)

    print("KERNEL_OK")
</pallas_src>

<mosaic_0001>
module attributes {stable_mosaic.version = 11 : i64} {
  func.func @_stats_kernel(%arg0: i32, %arg1: i32, %arg2: i32, %arg3: memref<1x4x512xf32, #tpu.memory_space<vmem>>, %arg4: memref<1x4x128xf32, #tpu.memory_space<vmem>>, %arg5: memref<1x4x128xf32, #tpu.memory_space<vmem>>) attributes {dimension_semantics = [#tpu.dimension_semantics<parallel>, #tpu.dimension_semantics<parallel>, #tpu.dimension_semantics<arbitrary>], iteration_bounds = array<i64: 2, 1, 1>, scalar_prefetch = 0 : i64, scratch_operands = 0 : i64, tpu.core_type = #tpu.core_type<tc>, window_params = [{transform_indices = @transform_0, window_bounds = array<i64: 1, 4, 512>}, {transform_indices = @transform_1, window_bounds = array<i64: 1, 4, 128>}, {transform_indices = @transform_2, window_bounds = array<i64: 1, 4, 128>}]} {
    %c0_i32 = arith.constant 0 : i32
    %0 = arith.cmpi eq, %arg2, %c0_i32 : i32
    %1 = arith.extui %0 : i1 to i32
    %c0_i32_0 = arith.constant 0 : i32
    %2 = arith.cmpi ne, %1, %c0_i32_0 : i32
    scf.if %2 {
      %cst_30 = arith.constant 0.000000e+00 : f32
      %41 = vector.broadcast %cst_30 : f32 to vector<1x4x128xf32>
      %c0_31 = arith.constant 0 : index
      %c0_32 = arith.constant 0 : index
      %c0_33 = arith.constant 0 : index
      %42 = vector.load %arg4[%c0_31, %c0_32, %c0_33] : memref<1x4x128xf32, #tpu.memory_space<vmem>>, vector<1x4x128xf32>
      tpu.vector_store %arg4[%c0_31, %c0_32, %c0_33], %41 {strides = array<i32>} : memref<1x4x128xf32, #tpu.memory_space<vmem>>, vector<1x4x128xf32>,
      %cst_34 = arith.constant 0.000000e+00 : f32
      %43 = vector.broadcast %cst_34 : f32 to vector<1x4x128xf32>
      %c0_35 = arith.constant 0 : index
      %c0_36 = arith.constant 0 : index
      %c0_37 = arith.constant 0 : index
      %44 = vector.load %arg5[%c0_35, %c0_36, %c0_37] : memref<1x4x128xf32, #tpu.memory_space<vmem>>, vector<1x4x128xf32>
      tpu.vector_store %arg5[%c0_35, %c0_36, %c0_37], %43 {strides = array<i32>} : memref<1x4x128xf32, #tpu.memory_space<vmem>>, vector<1x4x128xf32>,
    } else {
    }
    %cst = arith.constant 0.000000e+00 : f32
    %3 = vector.broadcast %cst : f32 to vector<4x128xf32>
    %cst_1 = arith.constant 0.000000e+00 : f32
    %4 = vector.broadcast %cst_1 : f32 to vector<4x128xf32>
    %c0 = arith.constant 0 : index
    %c0_2 = arith.constant 0 : index
    %c0_3 = arith.constant 0 : index
    %5 = vector.load %arg3[%c0, %c0_2, %c0_3] : memref<1x4x512xf32, #tpu.memory_space<vmem>>, vector<1x4x128xf32>
    %cst_4 = arith.constant dense<0.000000e+00> : vector<4x128xf32>
    %6 = vector.multi_reduction <add>, %5, %cst_4 [0] : vector<1x4x128xf32> to vector<4x128xf32>
    %7 = arith.addf %3, %6 : vector<4x128xf32>
    %8 = arith.mulf %5, %5 : vector<1x4x128xf32>
    %cst_5 = arith.constant dense<0.000000e+00> : vector<4x128xf32>
    %9 = vector.multi_reduction <add>, %8, %cst_5 [0] : vector<1x4x128xf32> to vector<4x128xf32>
    %10 = arith.addf %4, %9 : vector<4x128xf32>
    %c0_6 = arith.constant 0 : index
    %c0_7 = arith.constant 0 : index
    %c128 = arith.constant 128 : index
    %11 = vector.load %arg3[%c0_6, %c0_7, %c128] : memref<1x4x512xf32, #tpu.memory_space<vmem>>, vector<1x4x128xf32>
    %cst_8 = arith.constant dense<0.000000e+00> : vector<4x128xf32>
    %12 = vector.multi_reduction <add>, %11, %cst_8 [0] : vector<1x4x128xf32> to vector<4x128xf32>
    %13 = arith.addf %7, %12 : vector<4x128xf32>
    %14 = arith.mulf %11, %11 : vector<1x4x128xf32>
    %cst_9 = arith.constant dense<0.000000e+00> : vector<4x128xf32>
    %15 = vector.multi_reduction <add>, %14, %cst_9 [0] : vector<1x4x128xf32> to vector<4x128xf32>
    %16 = arith.addf %10, %15 : vector<4x128xf32>
    %c0_10 = arith.constant 0 : index
    %c0_11 = arith.constant 0 : index
    %c256 = arith.constant 256 : index
    %17 = vector.load %arg3[%c0_10, %c0_11, %c256] : memref<1x4x512xf32, #tpu.memory_space<vmem>>, vector<1x4x128xf32>
    %cst_12 = arith.constant dense<0.000000e+00> : vector<4x128xf32>
    %18 = vector.multi_reduction <add>, %17, %cst_12 [0] : vector<1x4x128xf32> to vector<4x128xf32>
    %19 = arith.addf %13, %18 : vector<4x128xf32>
    %20 = arith.mulf %17, %17 : vector<1x4x128xf32>
    %cst_13 = arith.constant dense<0.000000e+00> : vector<4x128xf32>
    %21 = vector.multi_reduction <add>, %20, %cst_13 [0] : vector<1x4x128xf32> to vector<4x128xf32>
    %22 = arith.addf %16, %21 : vector<4x128xf32>
    %c0_14 = arith.constant 0 : index
    %c0_15 = arith.constant 0 : index
    %c384 = arith.constant 384 : index
    %23 = vector.load %arg3[%c0_14, %c0_15, %c384] : memref<1x4x512xf32, #tpu.memory_space<vmem>>, vector<1x4x128xf32>
    %cst_16 = arith.constant dense<0.000000e+00> : vector<4x128xf32>
    %24 = vector.multi_reduction <add>, %23, %cst_16 [0] : vector<1x4x128xf32> to vector<4x128xf32>
    %25 = arith.addf %19, %24 : vector<4x128xf32>
    %26 = arith.mulf %23, %23 : vector<1x4x128xf32>
    %cst_17 = arith.constant dense<0.000000e+00> : vector<4x128xf32>
    %27 = vector.multi_reduction <add>, %26, %cst_17 [0] : vector<1x4x128xf32> to vector<4x128xf32>
    %28 = arith.addf %22, %27 : vector<4x128xf32>
    %c0_18 = arith.constant 0 : index
    %c0_19 = arith.constant 0 : index
    %c0_20 = arith.constant 0 : index
    %29 = vector.load %arg4[%c0_18, %c0_19, %c0_20] : memref<1x4x128xf32, #tpu.memory_space<vmem>>, vector<1x4x128xf32>
    %30 = vector.shape_cast %29 : vector<1x4x128xf32> to vector<4x128xf32>
    %31 = arith.addf %30, %25 : vector<4x128xf32>
    %c0_21 = arith.constant 0 : index
    %c0_22 = arith.constant 0 : index
    %c0_23 = arith.constant 0 : index
    %32 = vector.load %arg4[%c0_21, %c0_22, %c0_23] : memref<1x4x128xf32, #tpu.memory_space<vmem>>, vector<1x4x128xf32>
    %33 = vector.shape_cast %32 : vector<1x4x128xf32> to vector<4x128xf32>
    %34 = vector.shape_cast %31 : vector<4x128xf32> to vector<1x4x128xf32>
    tpu.vector_store %arg4[%c0_21, %c0_22, %c0_23], %34 {strides = array<i32>} : memref<1x4x128xf32, #tpu.memory_space<vmem>>, vector<1x4x128xf32>,
    %c0_24 = arith.constant 0 : index
    %c0_25 = arith.constant 0 : index
    %c0_26 = arith.constant 0 : index
    %35 = vector.load %arg5[%c0_24, %c0_25, %c0_26] : memref<1x4x128xf32, #tpu.memory_space<vmem>>, vector<1x4x128xf32>
    %36 = vector.shape_cast %35 : vector<1x4x128xf32> to vector<4x128xf32>
    %37 = arith.addf %36, %28 : vector<4x128xf32>
    %c0_27 = arith.constant 0 : index
    %c0_28 = arith.constant 0 : index
    %c0_29 = arith.constant 0 : index
    %38 = vector.load %arg5[%c0_27, %c0_28, %c0_29] : memref<1x4x128xf32, #tpu.memory_space<vmem>>, vector<1x4x128xf32>
    %39 = vector.shape_cast %38 : vector<1x4x128xf32> to vector<4x128xf32>
    %40 = vector.shape_cast %37 : vector<4x128xf32> to vector<1x4x128xf32>
    tpu.vector_store %arg5[%c0_27, %c0_28, %c0_29], %40 {strides = array<i32>} : memref<1x4x128xf32, #tpu.memory_space<vmem>>, vector<1x4x128xf32>,
    return
  }
  func.func @transform_0(%arg0: i32, %arg1: i32, %arg2: i32) -> (i32, i32, i32) {
    %c0_i32 = arith.constant 0 : i32
    return %arg0, %arg1, %arg2 : i32, i32, i32
  }
  func.func @transform_1(%arg0: i32, %arg1: i32, %arg2: i32) -> (i32, i32, i32) {
    %c0_i32 = arith.constant 0 : i32
    %c0_i32_0 = arith.constant 0 : i32
    return %arg0, %arg1, %c0_i32 : i32, i32, i32
  }
  func.func @transform_2(%arg0: i32, %arg1: i32, %arg2: i32) -> (i32, i32, i32) {
    %c0_i32 = arith.constant 0 : i32
    %c0_i32_0 = arith.constant 0 : i32
    return %arg0, %arg1, %c0_i32 : i32, i32, i32
  }
}

module attributes {stable_mosaic.version = 11 : i64} {
  func.func @_apply_kernel(%arg0: i32, %arg1: i32, %arg2: i32, %arg3: memref<1x4x512xf32, #tpu.memory_space<vmem>>, %arg4: memref<4x128xf32, #tpu.memory_space<vmem>>, %arg5: memref<4x128xf32, #tpu.memory_space<vmem>>, %arg6: memref<1x4x512xf32, #tpu.memory_space<vmem>>) attributes {dimension_semantics = [#tpu.dimension_semantics<parallel>, #tpu.dimension_semantics<parallel>, #tpu.dimension_semantics<parallel>], iteration_bounds = array<i64: 2, 1, 1>, scalar_prefetch = 0 : i64, scratch_operands = 0 : i64, tpu.core_type = #tpu.core_type<tc>, window_params = [{transform_indices = @transform_0, window_bounds = array<i64: 1, 4, 512>}, {transform_indices = @transform_1, window_bounds = array<i64: 4, 128>}, {transform_indices = @transform_2, window_bounds = array<i64: 4, 128>}, {transform_indices = @transform_3, window_bounds = array<i64: 1, 4, 512>}]} {
    %c0 = arith.constant 0 : index
    %c0_0 = arith.constant 0 : index
    %0 = vector.load %arg4[%c0, %c0_0] : memref<4x128xf32, #tpu.memory_space<vmem>>, vector<4x128xf32>
    %c0_1 = arith.constant 0 : index
    %c0_2 = arith.constant 0 : index
    %1 = vector.load %arg5[%c0_1, %c0_2] : memref<4x128xf32, #tpu.memory_space<vmem>>, vector<4x128xf32>
    %c0_3 = arith.constant 0 : index
    %c0_4 = arith.constant 0 : index
    %c0_5 = arith.constant 0 : index
    %2 = vector.load %arg3[%c0_3, %c0_4, %c0_5] : memref<1x4x512xf32, #tpu.memory_space<vmem>>, vector<1x4x128xf32>
    %3 = vector.shape_cast %0 : vector<4x128xf32> to vector<1x4x128xf32>
    %4 = arith.mulf %2, %3 : vector<1x4x128xf32>
    %5 = vector.shape_cast %1 : vector<4x128xf32> to vector<1x4x128xf32>
    %6 = arith.addf %4, %5 : vector<1x4x128xf32>
    %c0_6 = arith.constant 0 : index
    %c0_7 = arith.constant 0 : index
    %c0_8 = arith.constant 0 : index
    %7 = vector.load %arg6[%c0_6, %c0_7, %c0_8] : memref<1x4x512xf32, #tpu.memory_space<vmem>>, vector<1x4x128xf32>
    tpu.vector_store %arg6[%c0_6, %c0_7, %c0_8], %6 {strides = array<i32>} : memref<1x4x512xf32, #tpu.memory_space<vmem>>, vector<1x4x128xf32>,
    %c0_9 = arith.constant 0 : index
    %c0_10 = arith.constant 0 : index
    %c128 = arith.constant 128 : index
    %8 = vector.load %arg3[%c0_9, %c0_10, %c128] : memref<1x4x512xf32, #tpu.memory_space<vmem>>, vector<1x4x128xf32>
    %9 = vector.shape_cast %0 : vector<4x128xf32> to vector<1x4x128xf32>
    %10 = arith.mulf %8, %9 : vector<1x4x128xf32>
    %11 = vector.shape_cast %1 : vector<4x128xf32> to vector<1x4x128xf32>
    %12 = arith.addf %10, %11 : vector<1x4x128xf32>
    %c0_11 = arith.constant 0 : index
    %c0_12 = arith.constant 0 : index
    %c128_13 = arith.constant 128 : index
    %13 = vector.load %arg6[%c0_11, %c0_12, %c128_13] : memref<1x4x512xf32, #tpu.memory_space<vmem>>, vector<1x4x128xf32>
    tpu.vector_store %arg6[%c0_11, %c0_12, %c128_13], %12 {strides = array<i32>} : memref<1x4x512xf32, #tpu.memory_space<vmem>>, vector<1x4x128xf32>,
    %c0_14 = arith.constant 0 : index
    %c0_15 = arith.constant 0 : index
    %c256 = arith.constant 256 : index
    %14 = vector.load %arg3[%c0_14, %c0_15, %c256] : memref<1x4x512xf32, #tpu.memory_space<vmem>>, vector<1x4x128xf32>
    %15 = vector.shape_cast %0 : vector<4x128xf32> to vector<1x4x128xf32>
    %16 = arith.mulf %14, %15 : vector<1x4x128xf32>
    %17 = vector.shape_cast %1 : vector<4x128xf32> to vector<1x4x128xf32>
    %18 = arith.addf %16, %17 : vector<1x4x128xf32>
    %c0_16 = arith.constant 0 : index
    %c0_17 = arith.constant 0 : index
    %c256_18 = arith.constant 256 : index
    %19 = vector.load %arg6[%c0_16, %c0_17, %c256_18] : memref<1x4x512xf32, #tpu.memory_space<vmem>>, vector<1x4x128xf32>
    tpu.vector_store %arg6[%c0_16, %c0_17, %c256_18], %18 {strides = array<i32>} : memref<1x4x512xf32, #tpu.memory_space<vmem>>, vector<1x4x128xf32>,
    %c0_19 = arith.constant 0 : index
    %c0_20 = arith.constant 0 : index
    %c384 = arith.constant 384 : index
    %20 = vector.load %arg3[%c0_19, %c0_20, %c384] : memref<1x4x512xf32, #tpu.memory_space<vmem>>, vector<1x4x128xf32>
    %21 = vector.shape_cast %0 : vector<4x128xf32> to vector<1x4x128xf32>
    %22 = arith.mulf %20, %21 : vector<1x4x128xf32>
    %23 = vector.shape_cast %1 : vector<4x128xf32> to vector<1x4x128xf32>
    %24 = arith.addf %22, %23 : vector<1x4x128xf32>
    %c0_21 = arith.constant 0 : index
    %c0_22 = arith.constant 0 : index
    %c384_23 = arith.constant 384 : index
    %25 = vector.load %arg6[%c0_21, %c0_22, %c384_23] : memref<1x4x512xf32, #tpu.memory_space<vmem>>, vector<1x4x128xf32>
    tpu.vector_store %arg6[%c0_21, %c0_22, %c384_23], %24 {strides = array<i32>} : memref<1x4x512xf32, #tpu.memory_space<vmem>>, vector<1x4x128xf32>,
    return
  }
  func.func @transform_0(%arg0: i32, %arg1: i32, %arg2: i32) -> (i32, i32, i32) {
    %c0_i32 = arith.constant 0 : i32
    return %arg0, %arg1, %arg2 : i32, i32, i32
  }
  func.func @transform_1(%arg0: i32, %arg1: i32, %arg2: i32) -> (i32, i32) {
    %c0_i32 = arith.constant 0 : i32
    %c0_i32_0 = arith.constant 0 : i32
    return %arg1, %c0_i32 : i32, i32
  }
  func.func @transform_2(%arg0: i32, %arg1: i32, %arg2: i32) -> (i32, i32) {
    %c0_i32 = arith.constant 0 : i32
    %c0_i32_0 = arith.constant 0 : i32
    return %arg1, %c0_i32 : i32, i32
  }
  func.func @transform_3(%arg0: i32, %arg1: i32, %arg2: i32) -> (i32, i32, i32) {
    %c0_i32 = arith.constant 0 : i32
    return %arg0, %arg1, %arg2 : i32, i32, i32
  }
}

</mosaic_0001>

<llo_original>
// kernel: cbatchnorm2d.2
$region0: #{cbatchnorm2d.2}
  #allocation0 [shape = 'u32[]', space=smem, size = 0x4, offset = 0x4, fixed_abs, tag = 'smem constant byte address 0x4 - core index']
  #allocation1 [shape = 'u32[72,128]{1,0:T(1,128)}', space=vmem, size = 0x9000, scoped, tag = 'internal scratch']
  %s0 = inlined_call_operand.vmem [shape: f32[2,4,512], index: 0, kind: input, shape index: {}]
  %s1 = inlined_call_operand.vmem [shape: f32[2,4,128], index: 1, kind: output, shape index: {0}]
  %s2 = inlined_call_operand.vmem [shape: f32[2,4,128], index: 2, kind: output, shape index: {1}]
  %3 = xla_tuple %s1, %s2
  %s4 = sld [smem:[#allocation0]]
  $region49: #{cbatchnorm2d.2} parent=0
    _
  %s6 = ssub.s32 1, %s4
  %s7 = scalar_select 0, %s6, %s4
  loop: start=0, step=1, limit=4
  $region2: #{cbatchnorm2d.2} parent=0 // loop_pre_header
    _
  $region3: #{cbatchnorm2d.2} parent=0 // loop_header
    %s9 = sphi 0, %s13
    %p10 = scmp.ge.s32.totalorder %s9, 4
    %s16 = sphi 0, %s35
    %s17 = sphi 0, %s31
    %s18 = sphi 0, %s27
    %s19 = sphi 0, %s16
    %s20 = sphi 0, %s17
    %s21 = sphi 0, %s18
    %s22 = sphi 0, %s19
    %s23 = sphi 0, %s20
    %s24 = sphi 0, %s21
    %s42 = sphi 0, %s44
    %s45 = sphi 0, %s42
    %s46 = sphi 0, %s45
    %s62 = sphi 0, %s46
    %s70 = sphi 0, %s72
    %s73 = sphi 0, %s70
    %s74 = sphi 0, %s73
    %s90 = sphi 0, %s74
    %s98 = sphi 0, %s100
    %s101 = sphi 0, %s98
    %s102 = sphi 0, %s101
    %s118 = sphi 0, %s102
  $region4: #{cbatchnorm2d.2} parent=0 // loop_header_branch
    %12 = sbr.rel (%p10) target = $region8
  $region5: #{cbatchnorm2d.2} parent=0 // loop_body
    %s14 = ssub.s32 %s9, 1
    %s15 = ssub.s32 %s9, 2
    %s25 = sadd.s32 1, %s18
    %p26 = scmp.ge.s32.totalorder %s25, 1
    %s27 = scalar_select %p26, 0, %s25
    %s28 = sadd.s32 1, %s17
    %s29 = scalar_select %p26, %s28, %s17
    %p30 = scmp.ge.s32.totalorder %s29, 1
    %s31 = scalar_select %p30, 0, %s29
    %s32 = sadd.s32 1, %s16
    %s33 = scalar_select %p30, %s32, %s16
    %p34 = scmp.ge.s32.totalorder %s33, 2
    %s35 = scalar_select %p34, 0, %s33
    %s36 = ssub.s32 %s16, %s35
    %s37 = ssub.s32 %s17, %s31
    %s38 = sor.u32 %s36, %s37
    %s39 = ssub.s32 %s18, %s27
    %s40 = sor.u32 %s38, %s39
    %p41 = scmp.eq.s32.totalorder %s40, 0
    %s43 = sadd.s32 %s42, 1
    %s44 = scalar_select %p41, %s42, %s43
    %p47 = pneg %p41
    %p48 = scmp.eq.s32.totalorder %s9, 1
    %p49 = por %p47, %p48
    %p50 = scmp.ne.s32.totalorder %s42, %s45
    %p51 = scmp.eq.s32.totalorder %s9, 0
    %p52 = por %p50, %p51
    %p53 = scmp.ne.s32.totalorder %s42, %s45
    %p54 = scmp.eq.s32.totalorder %s14, 1
    %p55 = por %p53, %p54
    %p56 = scmp.ne.s32.totalorder %s45, %s46
    %p57 = scmp.eq.s32.totalorder %s14, 0
    %p58 = por %p56, %p57
    %p59 = scmp.ne.s32.totalorder %s45, %s46
    %p60 = scmp.eq.s32.totalorder %s15, 1
    %p61 = por %p59, %p60
    %p63 = scmp.ne.s32.totalorder %s46, %s62
    %p64 = scmp.eq.s32.totalorder %s15, 0
    %p65 = por %p63, %p64
    %s66 = ssub.s32 %s16, %s35
    %s67 = ssub.s32 %s17, %s31
    %s68 = sor.u32 %s66, %s67
    %p69 = scmp.eq.s32.totalorder %s68, 0
    %s71 = sadd.s32 %s70, 1
    %s72 = scalar_select %p69, %s70, %s71
    %p75 = pneg %p69
    %p76 = scmp.eq.s32.totalorder %s9, 1
    %p77 = por %p75, %p76
    %p78 = scmp.ne.s32.totalorder %s70, %s73
    %p79 = scmp.eq.s32.totalorder %s9, 0
    %p80 = por %p78, %p79
    %p81 = scmp.ne.s32.totalorder %s70, %s73
    %p82 = scmp.eq.s32.totalorder %s14, 1
    %p83 = por %p81, %p82
    %p84 = scmp.ne.s32.totalorder %s73, %s74
    %p85 = scmp.eq.s32.totalorder %s14, 0
    %p86 = por %p84, %p85
    %p87 = scmp.ne.s32.totalorder %s73, %s74
    %p88 = scmp.eq.s32.totalorder %s15, 1
    %p89 = por %p87, %p88
    %p91 = scmp.ne.s32.totalorder %s74, %s90
    %p92 = scmp.eq.s32.totalorder %s15, 0
    %p93 = por %p91, %p92
    %s94 = ssub.s32 %s16, %s35
    %s95 = ssub.s32 %s17, %s31
    %s96 = sor.u32 %s94, %s95
    %p97 = scmp.eq.s32.totalorder %s96, 0
    %s99 = sadd.s32 %s98, 1
    %s100 = scalar_select %p97, %s98, %s99
    %p103 = pneg %p97
    %p104 = scmp.eq.s32.totalorder %s9, 1
    %p105 = por %p103, %p104
    %p106 = scmp.ne.s32.totalorder %s98, %s101
    %p107 = scmp.eq.s32.totalorder %s9, 0
    %p108 = por %p106, %p107
    %p109 = scmp.ne.s32.totalorder %s98, %s101
    %p110 = scmp.eq.s32.totalorder %s14, 1
    %p111 = por %p109, %p110
    %p112 = scmp.ne.s32.totalorder %s101, %s102
    %p113 = scmp.eq.s32.totalorder %s14, 0
    %p114 = por %p112, %p113
    %p115 = scmp.ne.s32.totalorder %s101, %s102
    %p116 = scmp.eq.s32.totalorder %s15, 1
    %p117 = por %p115, %p116
    %p119 = scmp.ne.s32.totalorder %s102, %s118
    %p120 = scmp.eq.s32.totalorder %s15, 0
    %p121 = por %p119, %p120
    %p122 = scmp.le.s32.totalorder 1, %s9
    %p123 = scmp.lt.s32.totalorder %s9, 3
    %p124 = pnand %p122, %p123
    %p125 = pneg %p124
    // Predicated region
    $region9: #{cbatchnorm2d.2} parent=5 // pred_check
      _
    $region10: #{cbatchnorm2d.2} parent=5 // pred_check_branch
      %127 = sbr.rel (%p124) target = $region12
    $region11: #{cbatchnorm2d.2} parent=5 // pred_region
      %s128 = ssub.s32 %s9, 1
    $region12: #{cbatchnorm2d.2} parent=5 // pred_fallthru
      _
    %p129 = scmp.lt.s32.totalorder %s9, 2
    // Predicated region
    $region13: #{cbatchnorm2d.2} parent=5 // pred_check
      %p130 = pneg %p129
    $region14: #{cbatchnorm2d.2} parent=5 // pred_check_branch
      %132 = sbr.rel (%p130) target = $region16
    $region15: #{cbatchnorm2d.2} parent=5 // pred_region
      // Predicated region
      $region17: #{cbatchnorm2d.2} parent=15 // pred_check
        %p133 = pneg %p52
      $region18: #{cbatchnorm2d.2} parent=15 // pred_check_branch
        %135 = sbr.rel (%p133) target = $region20
      $region19: #{cbatchnorm2d.2} parent=15 // pred_region
        %s136 = smul.u32 4, %s18
        %p137 = scmp.lt.s32.totalorder %s16, 1
        %s138 = scalar_select %p137, %s16, 1
        %p139 = scmp.lt.s32.totalorder %s17, 0
        %s140 = scalar_select %p139, %s17, 0
        %p141 = scmp.lt.s32.totalorder %s136, 3
        %s142 = scalar_select %p141, %s136, 3
        %s143 = smul.addr %s140, 4
        %s144 = sadd.s32 %s142, %s143
        %s145 = smul.addr %s138, 4
        %s146 = sadd.s32 %s144, %s145
        %s147 = smul.addr %s146, 4
        %s148 = scalar_lea.vmem %s0, %s147
        %s149 = smul.u32 4, %s18
      $region20: #{cbatchnorm2d.2} parent=15 // pred_fallthru
        _
    $region16: #{cbatchnorm2d.2} parent=5 // pred_fallthru
      _
    %p150 = scmp.le.s32.totalorder 1, %s9
    %p151 = scmp.lt.s32.totalorder %s9, 3
    %p152 = pnand %p150, %p151
    %p153 = pneg %p152
    // Predicated region
    $region21: #{cbatchnorm2d.2} parent=5 // pred_check
      _
    $region22: #{cbatchnorm2d.2} parent=5 // pred_check_branch
      %155 = sbr.rel (%p152) target = $region24
    $region23: #{cbatchnorm2d.2} parent=5 // pred_region
      %s156 = ssub.s32 %s9, 1
      %s157 = smul.u32 4, %s21
      %p158 = scmp.lt.s32.totalorder %s19, 1
      %s159 = scalar_select %p158, %s19, 1
      %p160 = scmp.lt.s32.totalorder %s20, 0
      %s161 = scalar_select %p160, %s20, 0
      %p162 = scmp.lt.s32.totalorder %s157, 3
      %s163 = scalar_select %p162, %s157, 3
      %s164 = smul.addr %s161, 4
      %s165 = sadd.s32 %s163, %s164
      %s166 = smul.addr %s159, 4
      %s167 = sadd.s32 %s165, %s166
      %s168 = smul.addr %s167, 4
      %s169 = scalar_lea.vmem %s0, %s168
      %p170 = pneg %p58
      %p171 = pneg %p55
      %p172 = pneg %p86
      %p173 = pneg %p83
      %p174 = scmp.lt.s32.totalorder %s19, 1
      %s175 = scalar_select %p174, %s19, 1
      %p176 = scmp.lt.s32.totalorder %s20, 0
      %s177 = scalar_select %p176, %s20, 0
      %s178 = sadd.s32 %s177, %s175
      %s179 = smul.addr %s178, 4
      %s180 = scalar_lea.vmem %s1, %s179
      %p181 = pneg %p114
      %p182 = pneg %p111
      %p183 = scmp.lt.s32.totalorder %s19, 1
      %s184 = scalar_select %p183, %s19, 1
      %p185 = scmp.lt.s32.totalorder %s20, 0
      %s186 = scalar_select %p185, %s20, 0
      %s187 = sadd.s32 %s186, %s184
      %s188 = smul.addr %s187, 4
      %s189 = scalar_lea.vmem %s2, %s188
      %s190 = smul.u32 4, %s21
      %p191 = scmp.lt.s32.totalorder %s19, 1
      %s192 = scalar_select %p191, %s19, 1
      %p193 = scmp.lt.s32.totalorder %s20, 0
      %s194 = scalar_select %p193, %s20, 0
      %p195 = scmp.lt.s32.totalorder %s190, 3
      %s196 = scalar_select %p195, %s190, 3
      %s197 = smul.addr %s194, 4
      %s198 = sadd.s32 %s196, %s197
      %s199 = smul.addr %s192, 4
      %s200 = sadd.s32 %s198, %s199
      %s201 = smul.addr %s200, 4
      %s202 = scalar_lea.vmem %s0, %s201
      %s203 = smul.u32 4, %s21
      %p204 = scmp.lt.s32.totalorder %s19, 1
      %s205 = scalar_select %p204, %s19, 1
      %p206 = scmp.lt.s32.totalorder %s20, 0
      %s207 = scalar_select %p206, %s20, 0
      %s208 = sadd.s32 %s207, %s205
      %s209 = smul.addr %s208, 4
      %s210 = scalar_lea.vmem %s1, %s209
      %p211 = scmp.lt.s32.totalorder %s19, 1
      %s212 = scalar_select %p211, %s19, 1
      %p213 = scmp.lt.s32.totalorder %s20, 0
      %s214 = scalar_select %p213, %s20, 0
      %s215 = sadd.s32 %s214, %s212
      %s216 = smul.addr %s215, 4
      %s217 = scalar_lea.vmem %s2, %s216
      %p218 = scmp.eq.s32.totalorder %s21, 0
      // Predicated region
      $region25: #{cbatchnorm2d.2} parent=23 // pred_check
        %p219 = pneg %p218
      $region26: #{cbatchnorm2d.2} parent=23 // pred_check_branch
        %221 = sbr.rel (%p219) target = $region28
      $region27: #{cbatchnorm2d.2} parent=23 // pred_region
        %222 = vst [vmem:[%s210] sm:$0xf] 0.0
        %223 = vst [vmem:[%s217] sm:$0xf] 0.0
      $region28: #{cbatchnorm2d.2} parent=23 // pred_fallthru
        _
      %v224 = vld [vmem:[%s202] sm:$0xf]
      %v225 = vadd.f32 %v224, 0.0
      %v226 = vadd.f32 %v225, 0.0
      %v227 = vmul.f32 %v224, %v224
      %v228 = vadd.f32 %v227, 0.0
      %v229 = vadd.f32 %v228, 0.0
      %v230 = vld [vmem:[%s202 + $0x4] sm:$0xf]
      %v231 = vadd.f32 %v230, 0.0
      %v232 = vadd.f32 %v226, %v231
      %v233 = vmul.f32 %v230, %v230
      %v234 = vadd.f32 %v233, 0.0
      %v235 = vadd.f32 %v229, %v234
      %v236 = vld [vmem:[%s202 + $0x8] sm:$0xf]
      %v237 = vadd.f32 %v236, 0.0
      %v238 = vadd.f32 %v232, %v237
      %v239 = vmul.f32 %v236, %v236
      %v240 = vadd.f32 %v239, 0.0
      %v241 = vadd.f32 %v235, %v240
      %v242 = vld [vmem:[%s202 + $0xc] sm:$0xf]
      %v243 = vadd.f32 %v242, 0.0
      %v244 = vadd.f32 %v238, %v243
      %v245 = vmul.f32 %v242, %v242
      %v246 = vadd.f32 %v245, 0.0
      %v247 = vadd.f32 %v241, %v246
      %v248 = vld [vmem:[%s210] sm:$0xf]
      %v249 = vadd.f32 %v248, %v244
      %250 = vst [vmem:[%s210] sm:$0xf] %v249
      %v251 = vld [vmem:[%s217] sm:$0xf]
      %v252 = vadd.f32 %v251, %v247
      %253 = vst [vmem:[%s217] sm:$0xf] %v252
      %p254 = scmp.lt.s32.totalorder %s19, 1
      %s255 = scalar_select %p254, %s19, 1
      %p256 = scmp.lt.s32.totalorder %s20, 0
      %s257 = scalar_select %p256, %s20, 0
      %s258 = sadd.s32 %s257, %s255
      %s259 = smul.addr %s258, 4
      %s260 = scalar_lea.vmem %s1, %s259
      %p261 = scmp.lt.s32.totalorder %s19, 1
      %s262 = scalar_select %p261, %s19, 1
      %p263 = scmp.lt.s32.totalorder %s20, 0
      %s264 = scalar_select %p263, %s20, 0
      %s265 = sadd.s32 %s264, %s262
      %s266 = smul.addr %s265, 4
      %s267 = scalar_lea.vmem %s2, %s266
      // Predicated region
      $region29: #{cbatchnorm2d.2} parent=23 // pred_check
        %p268 = pneg %p83
      $region30: #{cbatchnorm2d.2} parent=23 // pred_check_branch
        %270 = sbr.rel (%p268) target = $region32
      $region31: #{cbatchnorm2d.2} parent=23 // pred_region
        _
      $region32: #{cbatchnorm2d.2} parent=23 // pred_fallthru
        _
      // Predicated region
      $region33: #{cbatchnorm2d.2} parent=23 // pred_check
        %p271 = pneg %p111
      $region34: #{cbatchnorm2d.2} parent=23 // pred_check_branch
        %273 = sbr.rel (%p271) target = $region36
      $region35: #{cbatchnorm2d.2} parent=23 // pred_region
        _
      $region36: #{cbatchnorm2d.2} parent=23 // pred_fallthru
        _
    $region24: #{cbatchnorm2d.2} parent=5 // pred_fallthru
      _
    %p274 = scmp.le.s32.totalorder 2, %s9
    // Predicated region
    $region37: #{cbatchnorm2d.2} parent=5 // pred_check
      %p275 = pneg %p274
    $region38: #{cbatchnorm2d.2} parent=5 // pred_check_branch
      %277 = sbr.rel (%p275) target = $region40
    $region39: #{cbatchnorm2d.2} parent=5 // pred_region
      %s278 = ssub.s32 %s9, 2
      // Predicated region
      $region41: #{cbatchnorm2d.2} parent=39 // pred_check
        %p279 = pneg %p89
      $region42: #{cbatchnorm2d.2} parent=39 // pred_check_branch
        %281 = sbr.rel (%p279) target = $region44
      $region43: #{cbatchnorm2d.2} parent=39 // pred_region
        %p282 = scmp.lt.s32.totalorder %s22, 1
        %s283 = scalar_select %p282, %s22, 1
        %p284 = scmp.lt.s32.totalorder %s23, 0
        %s285 = scalar_select %p284, %s23, 0
        %s286 = sadd.s32 %s285, %s283
        %s287 = smul.addr %s286, 4
        %s288 = scalar_lea.vmem %s1, %s287
      $region44: #{cbatchnorm2d.2} parent=39 // pred_fallthru
        _
      // Predicated region
      $region45: #{cbatchnorm2d.2} parent=39 // pred_check
        %p289 = pneg %p117
      $region46: #{cbatchnorm2d.2} parent=39 // pred_check_branch
        %291 = sbr.rel (%p289) target = $region48
      $region47: #{cbatchnorm2d.2} parent=39 // pred_region
        %p292 = scmp.lt.s32.totalorder %s22, 1
        %s293 = scalar_select %p292, %s22, 1
        %p294 = scmp.lt.s32.totalorder %s23, 0
        %s295 = scalar_select %p294, %s23, 0
        %s296 = sadd.s32 %s295, %s293
        %s297 = smul.addr %s296, 4
        %s298 = scalar_lea.vmem %s2, %s297
      $region48: #{cbatchnorm2d.2} parent=39 // pred_fallthru
        _
    $region40: #{cbatchnorm2d.2} parent=5 // pred_fallthru
      _
  $region6: #{cbatchnorm2d.2} parent=0 // loop_footer
    %s13 = sadd.s32 1, %s9
  $region7: #{cbatchnorm2d.2} parent=0 // loop_footer_branch
    %8 = sbr.rel target = $region3
  $region8: #{cbatchnorm2d.2} parent=0 // loop_exit
    _

// kernel: cbatchnorm2d.3
$region0: #{cbatchnorm2d.3}
  #allocation0 [shape = 'u32[]', space=smem, size = 0x4, offset = 0x4, fixed_abs, tag = 'smem constant byte address 0x4 - core index']
  #allocation1 [shape = 'u32[72,128]{1,0:T(1,128)}', space=vmem, size = 0x9000, scoped, tag = 'internal scratch']
  %s0 = inlined_call_operand.vmem [shape: f32[2,4,512], index: 0, kind: input, shape index: {}]
  %s1 = inlined_call_operand.vmem [shape: f32[4,128], index: 1, kind: input, shape index: {}]
  %s2 = inlined_call_operand.vmem [shape: f32[4,128], index: 2, kind: input, shape index: {}]
  %s3 = inlined_call_operand.vmem [shape: f32[2,4,512], index: 3, kind: output, shape index: {}]
  %s4 = sld [smem:[#allocation0]]
  $region45: #{cbatchnorm2d.3} parent=0
    _
  %s6 = ssub.s32 1, %s4
  %s7 = scalar_select 0, %s6, %s4
  loop: start=0, step=1, limit=4
  $region2: #{cbatchnorm2d.3} parent=0 // loop_pre_header
    _
  $region3: #{cbatchnorm2d.3} parent=0 // loop_header
    %s9 = sphi 0, %s13
    %p10 = scmp.ge.s32.totalorder %s9, 4
    %s16 = sphi 0, %s35
    %s17 = sphi 0, %s31
    %s18 = sphi 0, %s27
    %s19 = sphi 0, %s16
    %s20 = sphi 0, %s17
    %s21 = sphi 0, %s18
    %s22 = sphi 0, %s19
    %s23 = sphi 0, %s20
    %s24 = sphi 0, %s21
    %s42 = sphi 0, %s44
    %s45 = sphi 0, %s42
    %s46 = sphi 0, %s45
    %s62 = sphi 0, %s46
    %s68 = sphi 0, %s70
    %s71 = sphi 0, %s68
    %s72 = sphi 0, %s71
    %s88 = sphi 0, %s72
    %s94 = sphi 0, %s96
    %s97 = sphi 0, %s94
    %s98 = sphi 0, %s97
    %s114 = sphi 0, %s98
    %s124 = sphi 0, %s126
    %s127 = sphi 0, %s124
    %s128 = sphi 0, %s127
    %s144 = sphi 0, %s128
  $region4: #{cbatchnorm2d.3} parent=0 // loop_header_branch
    %12 = sbr.rel (%p10) target = $region8
  $region5: #{cbatchnorm2d.3} parent=0 // loop_body
    %s14 = ssub.s32 %s9, 1
    %s15 = ssub.s32 %s9, 2
    %s25 = sadd.s32 1, %s18
    %p26 = scmp.ge.s32.totalorder %s25, 1
    %s27 = scalar_select %p26, 0, %s25
    %s28 = sadd.s32 1, %s17
    %s29 = scalar_select %p26, %s28, %s17
    %p30 = scmp.ge.s32.totalorder %s29, 1
    %s31 = scalar_select %p30, 0, %s29
    %s32 = sadd.s32 1, %s16
    %s33 = scalar_select %p30, %s32, %s16
    %p34 = scmp.ge.s32.totalorder %s33, 2
    %s35 = scalar_select %p34, 0, %s33
    %s36 = ssub.s32 %s16, %s35
    %s37 = ssub.s32 %s17, %s31
    %s38 = sor.u32 %s36, %s37
    %s39 = ssub.s32 %s18, %s27
    %s40 = sor.u32 %s38, %s39
    %p41 = scmp.eq.s32.totalorder %s40, 0
    %s43 = sadd.s32 %s42, 1
    %s44 = scalar_select %p41, %s42, %s43
    %p47 = pneg %p41
    %p48 = scmp.eq.s32.totalorder %s9, 1
    %p49 = por %p47, %p48
    %p50 = scmp.ne.s32.totalorder %s42, %s45
    %p51 = scmp.eq.s32.totalorder %s9, 0
    %p52 = por %p50, %p51
    %p53 = scmp.ne.s32.totalorder %s42, %s45
    %p54 = scmp.eq.s32.totalorder %s14, 1
    %p55 = por %p53, %p54
    %p56 = scmp.ne.s32.totalorder %s45, %s46
    %p57 = scmp.eq.s32.totalorder %s14, 0
    %p58 = por %p56, %p57
    %p59 = scmp.ne.s32.totalorder %s45, %s46
    %p60 = scmp.eq.s32.totalorder %s15, 1
    %p61 = por %p59, %p60
    %p63 = scmp.ne.s32.totalorder %s46, %s62
    %p64 = scmp.eq.s32.totalorder %s15, 0
    %p65 = por %p63, %p64
    %s66 = ssub.s32 %s17, %s31
    %p67 = scmp.eq.s32.totalorder %s66, 0
    %s69 = sadd.s32 %s68, 1
    %s70 = scalar_select %p67, %s68, %s69
    %p73 = pneg %p67
    %p74 = scmp.eq.s32.totalorder %s9, 1
    %p75 = por %p73, %p74
    %p76 = scmp.ne.s32.totalorder %s68, %s71
    %p77 = scmp.eq.s32.totalorder %s9, 0
    %p78 = por %p76, %p77
    %p79 = scmp.ne.s32.totalorder %s68, %s71
    %p80 = scmp.eq.s32.totalorder %s14, 1
    %p81 = por %p79, %p80
    %p82 = scmp.ne.s32.totalorder %s71, %s72
    %p83 = scmp.eq.s32.totalorder %s14, 0
    %p84 = por %p82, %p83
    %p85 = scmp.ne.s32.totalorder %s71, %s72
    %p86 = scmp.eq.s32.totalorder %s15, 1
    %p87 = por %p85, %p86
    %p89 = scmp.ne.s32.totalorder %s72, %s88
    %p90 = scmp.eq.s32.totalorder %s15, 0
    %p91 = por %p89, %p90
    %s92 = ssub.s32 %s17, %s31
    %p93 = scmp.eq.s32.totalorder %s92, 0
    %s95 = sadd.s32 %s94, 1
    %s96 = scalar_select %p93, %s94, %s95
    %p99 = pneg %p93
    %p100 = scmp.eq.s32.totalorder %s9, 1
    %p101 = por %p99, %p100
    %p102 = scmp.ne.s32.totalorder %s94, %s97
    %p103 = scmp.eq.s32.totalorder %s9, 0
    %p104 = por %p102, %p103
    %p105 = scmp.ne.s32.totalorder %s94, %s97
    %p106 = scmp.eq.s32.totalorder %s14, 1
    %p107 = por %p105, %p106
    %p108 = scmp.ne.s32.totalorder %s97, %s98
    %p109 = scmp.eq.s32.totalorder %s14, 0
    %p110 = por %p108, %p109
    %p111 = scmp.ne.s32.totalorder %s97, %s98
    %p112 = scmp.eq.s32.totalorder %s15, 1
    %p113 = por %p111, %p112
    %p115 = scmp.ne.s32.totalorder %s98, %s114
    %p116 = scmp.eq.s32.totalorder %s15, 0
    %p117 = por %p115, %p116
    %s118 = ssub.s32 %s16, %s35
    %s119 = ssub.s32 %s17, %s31
    %s120 = sor.u32 %s118, %s119
    %s121 = ssub.s32 %s18, %s27
    %s122 = sor.u32 %s120, %s121
    %p123 = scmp.eq.s32.totalorder %s122, 0
    %s125 = sadd.s32 %s124, 1
    %s126 = scalar_select %p123, %s124, %s125
    %p129 = pneg %p123
    %p130 = scmp.eq.s32.totalorder %s9, 1
    %p131 = por %p129, %p130
    %p132 = scmp.ne.s32.totalorder %s124, %s127
    %p133 = scmp.eq.s32.totalorder %s9, 0
    %p134 = por %p132, %p133
    %p135 = scmp.ne.s32.totalorder %s124, %s127
    %p136 = scmp.eq.s32.totalorder %s14, 1
    %p137 = por %p135, %p136
    %p138 = scmp.ne.s32.totalorder %s127, %s128
    %p139 = scmp.eq.s32.totalorder %s14, 0
    %p140 = por %p138, %p139
    %p141 = scmp.ne.s32.totalorder %s127, %s128
    %p142 = scmp.eq.s32.totalorder %s15, 1
    %p143 = por %p141, %p142
    %p145 = scmp.ne.s32.totalorder %s128, %s144
    %p146 = scmp.eq.s32.totalorder %s15, 0
    %p147 = por %p145, %p146
    %p148 = scmp.le.s32.totalorder 1, %s9
    %p149 = scmp.lt.s32.totalorder %s9, 3
    %p150 = pnand %p148, %p149
    %p151 = pneg %p150
    // Predicated region
    $region9: #{cbatchnorm2d.3} parent=5 // pred_check
      _
    $region10: #{cbatchnorm2d.3} parent=5 // pred_check_branch
      %153 = sbr.rel (%p150) target = $region12
    $region11: #{cbatchnorm2d.3} parent=5 // pred_region
      %s154 = ssub.s32 %s9, 1
      // Predicated region
      $region13: #{cbatchnorm2d.3} parent=11 // pred_check
        %p155 = pneg %p84
      $region14: #{cbatchnorm2d.3} parent=11 // pred_check_branch
        %157 = sbr.rel (%p155) target = $region16
      $region15: #{cbatchnorm2d.3} parent=11 // pred_region
        %p158 = scmp.lt.s32.totalorder %s20, 0
        %s159 = scalar_select %p158, %s20, 0
        %s160 = smul.addr %s159, 4
        %s161 = scalar_lea.vmem %s1, %s160
      $region16: #{cbatchnorm2d.3} parent=11 // pred_fallthru
        _
      // Predicated region
      $region17: #{cbatchnorm2d.3} parent=11 // pred_check
        %p162 = pneg %p110
      $region18: #{cbatchnorm2d.3} parent=11 // pred_check_branch
        %164 = sbr.rel (%p162) target = $region20
      $region19: #{cbatchnorm2d.3} parent=11 // pred_region
        %p165 = scmp.lt.s32.totalorder %s20, 0
        %s166 = scalar_select %p165, %s20, 0
        %s167 = smul.addr %s166, 4
        %s168 = scalar_lea.vmem %s2, %s167
      $region20: #{cbatchnorm2d.3} parent=11 // pred_fallthru
        _
    $region12: #{cbatchnorm2d.3} parent=5 // pred_fallthru
      _
    %p169 = scmp.lt.s32.totalorder %s9, 2
    // Predicated region
    $region21: #{cbatchnorm2d.3} parent=5 // pred_check
      %p170 = pneg %p169
    $region22: #{cbatchnorm2d.3} parent=5 // pred_check_branch
      %172 = sbr.rel (%p170) target = $region24
    $region23: #{cbatchnorm2d.3} parent=5 // pred_region
      // Predicated region
      $region25: #{cbatchnorm2d.3} parent=23 // pred_check
        %p173 = pneg %p52
      $region26: #{cbatchnorm2d.3} parent=23 // pred_check_branch
        %175 = sbr.rel (%p173) target = $region28
      $region27: #{cbatchnorm2d.3} parent=23 // pred_region
        %s176 = smul.u32 4, %s18
        %p177 = scmp.lt.s32.totalorder %s16, 1
        %s178 = scalar_select %p177, %s16, 1
        %p179 = scmp.lt.s32.totalorder %s17, 0
        %s180 = scalar_select %p179, %s17, 0
        %p181 = scmp.lt.s32.totalorder %s176, 3
        %s182 = scalar_select %p181, %s176, 3
        %s183 = smul.addr %s180, 4
        %s184 = sadd.s32 %s182, %s183
        %s185 = smul.addr %s178, 4
        %s186 = sadd.s32 %s184, %s185
        %s187 = smul.addr %s186, 4
        %s188 = scalar_lea.vmem %s0, %s187
        %s189 = smul.u32 4, %s18
      $region28: #{cbatchnorm2d.3} parent=23 // pred_fallthru
        _
    $region24: #{cbatchnorm2d.3} parent=5 // pred_fallthru
      _
    %p190 = scmp.le.s32.totalorder 1, %s9
    %p191 = scmp.lt.s32.totalorder %s9, 3
    %p192 = pnand %p190, %p191
    %p193 = pneg %p192
    // Predicated region
    $region29: #{cbatchnorm2d.3} parent=5 // pred_check
      _
    $region30: #{cbatchnorm2d.3} parent=5 // pred_check_branch
      %195 = sbr.rel (%p192) target = $region32
    $region31: #{cbatchnorm2d.3} parent=5 // pred_region
      %s196 = ssub.s32 %s9, 1
      %s197 = smul.u32 4, %s21
      %p198 = scmp.lt.s32.totalorder %s19, 1
      %s199 = scalar_select %p198, %s19, 1
      %p200 = scmp.lt.s32.totalorder %s20, 0
      %s201 = scalar_select %p200, %s20, 0
      %p202 = scmp.lt.s32.totalorder %s197, 3
      %s203 = scalar_select %p202, %s197, 3
      %s204 = smul.addr %s201, 4
      %s205 = sadd.s32 %s203, %s204
      %s206 = smul.addr %s199, 4
      %s207 = sadd.s32 %s205, %s206
      %s208 = smul.addr %s207, 4
      %s209 = scalar_lea.vmem %s0, %s208
      %p210 = pneg %p58
      %p211 = pneg %p55
      %p212 = scmp.lt.s32.totalorder %s20, 0
      %s213 = scalar_select %p212, %s20, 0
      %s214 = smul.addr %s213, 4
      %s215 = scalar_lea.vmem %s1, %s214
      %p216 = pneg %p84
      %p217 = pneg %p81
      %p218 = scmp.lt.s32.totalorder %s20, 0
      %s219 = scalar_select %p218, %s20, 0
      %s220 = smul.addr %s219, 4
      %s221 = scalar_lea.vmem %s2, %s220
      %p222 = pneg %p110
      %p223 = pneg %p107
      %p224 = pneg %p140
      %p225 = pneg %p137
      %s226 = smul.u32 4, %s21
      %p227 = scmp.lt.s32.totalorder %s19, 1
      %s228 = scalar_select %p227, %s19, 1
      %p229 = scmp.lt.s32.totalorder %s20, 0
      %s230 = scalar_select %p229, %s20, 0
      %p231 = scmp.lt.s32.totalorder %s226, 3
      %s232 = scalar_select %p231, %s226, 3
      %s233 = smul.addr %s230, 4
      %s234 = sadd.s32 %s232, %s233
      %s235 = smul.addr %s228, 4
      %s236 = sadd.s32 %s234, %s235
      %s237 = smul.addr %s236, 4
      %s238 = scalar_lea.vmem %s3, %s237
      %s239 = smul.u32 4, %s21
      %p240 = scmp.lt.s32.totalorder %s19, 1
      %s241 = scalar_select %p240, %s19, 1
      %p242 = scmp.lt.s32.totalorder %s20, 0
      %s243 = scalar_select %p242, %s20, 0
      %p244 = scmp.lt.s32.totalorder %s239, 3
      %s245 = scalar_select %p244, %s239, 3
      %s246 = smul.addr %s243, 4
      %s247 = sadd.s32 %s245, %s246
      %s248 = smul.addr %s241, 4
      %s249 = sadd.s32 %s247, %s248
      %s250 = smul.addr %s249, 4
      %s251 = scalar_lea.vmem %s0, %s250
      %s252 = smul.u32 4, %s21
      %p253 = scmp.lt.s32.totalorder %s20, 0
      %s254 = scalar_select %p253, %s20, 0
      %s255 = smul.addr %s254, 4
      %s256 = scalar_lea.vmem %s1, %s255
      %p257 = scmp.lt.s32.totalorder %s20, 0
      %s258 = scalar_select %p257, %s20, 0
      %s259 = smul.addr %s258, 4
      %s260 = scalar_lea.vmem %s2, %s259
      %s261 = smul.u32 4, %s21
      %p262 = scmp.lt.s32.totalorder %s19, 1
      %s263 = scalar_select %p262, %s19, 1
      %p264 = scmp.lt.s32.totalorder %s20, 0
      %s265 = scalar_select %p264, %s20, 0
      %p266 = scmp.lt.s32.totalorder %s261, 3
      %s267 = scalar_select %p266, %s261, 3
      %s268 = smul.addr %s265, 4
      %s269 = sadd.s32 %s267, %s268
      %s270 = smul.addr %s263, 4
      %s271 = sadd.s32 %s269, %s270
      %s272 = smul.addr %s271, 4
      %s273 = scalar_lea.vmem %s3, %s272
      %s274 = smul.u32 4, %s21
      %v275 = vld [vmem:[%s256] sm:$0xf]
      %v276 = vld [vmem:[%s260] sm:$0xf]
      %v277 = vld [vmem:[%s251] sm:$0xf]
      %v278 = vmul.f32 %v277, %v275
      %v279 = vadd.f32 %v278, %v276
      %280 = vst [vmem:[%s273] sm:$0xf] %v279
      %v281 = vld [vmem:[%s251 + $0x4] sm:$0xf]
      %v282 = vmul.f32 %v281, %v275
      %v283 = vadd.f32 %v282, %v276
      %284 = vst [vmem:[%s273 + $0x4] sm:$0xf] %v283
      %v285 = vld [vmem:[%s251 + $0x8] sm:$0xf]
      %v286 = vmul.f32 %v285, %v275
      %v287 = vadd.f32 %v286, %v276
      %288 = vst [vmem:[%s273 + $0x8] sm:$0xf] %v287
      %v289 = vld [vmem:[%s251 + $0xc] sm:$0xf]
      %v290 = vmul.f32 %v289, %v275
      %v291 = vadd.f32 %v290, %v276
      %292 = vst [vmem:[%s273 + $0xc] sm:$0xf] %v291
      %s293 = smul.u32 4, %s21
      %p294 = scmp.lt.s32.totalorder %s19, 1
      %s295 = scalar_select %p294, %s19, 1
      %p296 = scmp.lt.s32.totalorder %s20, 0
      %s297 = scalar_select %p296, %s20, 0
      %p298 = scmp.lt.s32.totalorder %s293, 3
      %s299 = scalar_select %p298, %s293, 3
      %s300 = smul.addr %s297, 4
      %s301 = sadd.s32 %s299, %s300
      %s302 = smul.addr %s295, 4
      %s303 = sadd.s32 %s301, %s302
      %s304 = smul.addr %s303, 4
      %s305 = scalar_lea.vmem %s3, %s304
      // Predicated region
      $region33: #{cbatchnorm2d.3} parent=31 // pred_check
        %p306 = pneg %p137
      $region34: #{cbatchnorm2d.3} parent=31 // pred_check_branch
        %308 = sbr.rel (%p306) target = $region36
      $region35: #{cbatchnorm2d.3} parent=31 // pred_region
        %s309 = smul.u32 4, %s21
      $region36: #{cbatchnorm2d.3} parent=31 // pred_fallthru
        _
    $region32: #{cbatchnorm2d.3} parent=5 // pred_fallthru
      _
    %p310 = scmp.le.s32.totalorder 2, %s9
    // Predicated region
    $region37: #{cbatchnorm2d.3} parent=5 // pred_check
      %p311 = pneg %p310
    $region38: #{cbatchnorm2d.3} parent=5 // pred_check_branch
      %313 = sbr.rel (%p311) target = $region40
    $region39: #{cbatchnorm2d.3} parent=5 // pred_region
      %s314 = ssub.s32 %s9, 2
      // Predicated region
      $region41: #{cbatchnorm2d.3} parent=39 // pred_check
        %p315 = pneg %p143
      $region42: #{cbatchnorm2d.3} parent=39 // pred_check_branch
        %317 = sbr.rel (%p315) target = $region44
      $region43: #{cbatchnorm2d.3} parent=39 // pred_region
        %s318 = smul.u32 4, %s24
        %p319 = scmp.lt.s32.totalorder %s22, 1
        %s320 = scalar_select %p319, %s22, 1
        %p321 = scmp.lt.s32.totalorder %s23, 0
        %s322 = scalar_select %p321, %s23, 0
        %p323 = scmp.lt.s32.totalorder %s318, 3
        %s324 = scalar_select %p323, %s318, 3
        %s325 = smul.addr %s322, 4
        %s326 = sadd.s32 %s324, %s325
        %s327 = smul.addr %s320, 4
        %s328 = sadd.s32 %s326, %s327
        %s329 = smul.addr %s328, 4
        %s330 = scalar_lea.vmem %s3, %s329
      $region44: #{cbatchnorm2d.3} parent=39 // pred_fallthru
        _
    $region40: #{cbatchnorm2d.3} parent=5 // pred_fallthru
      _
  $region6: #{cbatchnorm2d.3} parent=0 // loop_footer
    %s13 = sadd.s32 1, %s9
  $region7: #{cbatchnorm2d.3} parent=0 // loop_footer_branch
    %8 = sbr.rel target = $region3
  $region8: #{cbatchnorm2d.3} parent=0 // loop_exit
    _

</llo_original>
